<compile_context>
chip_gen: v6e
topology: v6e:2x2x1
jax: 0.10.0
libtpu: 0.0.40
codegen_flags: <defaults>
</compile_context>

<pallas_src>
import functools

import jax
import jax.numpy as jnp
from jax.experimental import pallas as pl
from jax.experimental.pallas import tpu as pltpu


def _round_up(a, b):
    return -(-a // b) * b


def _round_down(a, b):
    return (a // b) * b


def _device_defaults():
    """(target_block_bytes, vmem_limit_bytes) tuned per TPU generation."""
    kind = ""
    try:
        kind = jax.devices()[0].device_kind.lower().replace(" ", "")
    except Exception:  # pragma: no cover - defensive
        pass
    if "v5lite" in kind or "v5e" in kind:
        # ~820 GB/s HBM: 2 MiB blocks are already ~93% step-efficient.
        return 2 << 20, 32 << 20
    if "v7" in kind or "tpu7" in kind:
        # ~3.2 TB/s HBM: 8 MiB blocks cut per-step overhead from ~25% to <7%.
        # 4 x 8 MiB double-buffered = 32 MiB, well under the 64 MiB/TC ceiling.
        return 8 << 20, 48 << 20
    if "v6" in kind:
        # ~1.4 TB/s HBM, 128 MiB VMEM: plenty of headroom for 8 MiB blocks.
        return 8 << 20, 64 << 20
    if "v4" in kind or "v5p" in kind or "v5" in kind:
        return 8 << 20, 64 << 20
    # Unknown chip: stay inside every default scoped-VMEM limit.
    return 2 << 20, None


def _general_relu_kernel(x_ref, o_ref, *, leak, sub, maxv):
    x = x_ref[...]
    if leak is not None:
        l = jnp.asarray(leak, x.dtype)
        if 0.0 <= float(leak) <= 1.0:
            # 2-VALU-op form of leaky_relu, valid for 0 <= leak <= 1.
            # Matches the where() form for all finite inputs; IEEE edge cases
            # (x=-inf with leak=0 -> NaN, sign of -0.0) differ but also match
            # typical framework behaviour closely.
            y = jnp.maximum(x, x * l)
        else:
            y = jnp.where(x >= 0, x, x * l)
    else:
        y = jnp.maximum(x, jnp.asarray(0, x.dtype))
    if sub is not None:
        y = y - jnp.asarray(sub, x.dtype)
    if maxv is not None:
        y = jnp.minimum(y, jnp.asarray(maxv, x.dtype))
    o_ref[...] = y


def _general_relu_xla(x, leak, sub, maxv):
    """Plain-XLA elementwise path (tiny tensors / <128-element tails)."""
    dtype = x.dtype
    if leak is not None:
        y = jnp.where(x >= 0, x, x * jnp.asarray(leak, dtype))
    else:
        y = jnp.maximum(x, jnp.asarray(0, dtype))
    if sub is not None:
        y = y - jnp.asarray(sub, dtype)
    if maxv is not None:
        y = jnp.minimum(y, jnp.asarray(maxv, dtype))
    return y.astype(dtype)


def _general_relu_pallas_flat(flat, leak, sub, maxv, target_block_bytes,
                              vmem_limit_bytes, min_grid_steps):
    """Pallas kernel over a flat array whose size is a multiple of 128."""
    total = flat.size
    dtype = flat.dtype
    itemsize = jnp.dtype(dtype).itemsize
    # dtype-aware sublane multiple: 8 (f32), 16 (bf16/f16), 32 (int8/fp8).
    sub_mult = max(8, 32 // max(1, itemsize))

    # Widest lane count (multiple of 128) dividing the element count ->
    # lane-dense 2-D slab with no pad / slice copies.
    lane_w = 128
    for cand in (8192, 4096, 2048, 1024, 512, 256, 128):
        if total % cand == 0:
            lane_w = cand
            break
    rows = total // lane_w
    x2d = flat.reshape(rows, lane_w)

    row_bytes = lane_w * itemsize
    if rows <= sub_mult:
        # Tiny slab: single block equal to the full array dims (no (8,128)
        # divisibility requirement when block_shape == array shape).
        tile_rows = rows
        grid = (1,)
    else:
        # ~target_block_bytes per buffer, rounded to the native sublane
        # multiple ...
        tile_rows = max(sub_mult,
                        (target_block_bytes // row_bytes) // sub_mult * sub_mult)
        # ... but capped so the pipeline always gets >= min_grid_steps steps:
        # with a single block there is no double-buffering (in-DMA, compute,
        # out-DMA serialize) and v7x's second TensorCore sits idle.
        cap = _round_up(pl.cdiv(rows, min_grid_steps), sub_mult)
        tile_rows = min(tile_rows, cap, _round_down(rows, sub_mult))
        tile_rows = max(tile_rows, sub_mult)
        grid = (pl.cdiv(rows, tile_rows),)   # partial last block is masked

    kernel = functools.partial(_general_relu_kernel, leak=leak, sub=sub,
                               maxv=maxv)
    cp_kwargs = dict(dimension_semantics=("parallel",))
    if vmem_limit_bytes is not None:
        cp_kwargs["vmem_limit_bytes"] = int(vmem_limit_bytes)

    out2d = pl.pallas_call(
        kernel,
        out_shape=jax.ShapeDtypeStruct((rows, lane_w), dtype),
        grid_spec=pltpu.PrefetchScalarGridSpec(
            num_scalar_prefetch=0,
            grid=grid,
            in_specs=[pl.BlockSpec((tile_rows, lane_w), lambda i: (i, 0))],
            out_specs=pl.BlockSpec((tile_rows, lane_w), lambda i: (i, 0)),
        ),
        compiler_params=pltpu.CompilerParams(**cp_kwargs),
    )(x2d)
    return out2d.reshape(-1)


def general_relu(x, leak=None, sub=None, maxv=None, *,
                 target_block_bytes=None, vmem_limit_bytes=None,
                 min_grid_steps=4):
    """Pallas TPU implementation of GeneralRelu.forward.

    x: any-shape array (e.g. NCHW). Returns same shape / dtype.
    leak / sub / maxv must be static Python scalars (module hyper-parameters),
    not traced values.
    """
    if x.size == 0:
        return x

    if target_block_bytes is None or vmem_limit_bytes is None:
        dflt_blk, dflt_vmem = _device_defaults()
        if target_block_bytes is None:
            target_block_bytes = dflt_blk
        if vmem_limit_bytes is None:
            vmem_limit_bytes = dflt_vmem

    total = x.size
    main = (total // 128) * 128

    if main == total:
        # Common aligned case (e.g. NCHW conv activations): pure Pallas path.
        out = _general_relu_pallas_flat(x.reshape(-1), leak, sub, maxv,
                                        target_block_bytes, vmem_limit_bytes,
                                        min_grid_steps)
        return out.reshape(x.shape)

    if main == 0:
        # Whole tensor is smaller than one lane-vector: not worth a kernel.
        return _general_relu_xla(x, leak, sub, maxv)

    # Rare misaligned case: Pallas on the 128-aligned prefix, plain XLA on the
    # <128-element tail (avoids the pad-in + slice-out HBM round trips of a
    # padded fallback).
    flat = x.reshape(-1)
    head = _general_relu_pallas_flat(flat[:main], leak, sub, maxv,
                                     target_block_bytes, vmem_limit_bytes,
                                     min_grid_steps)
    tail = _general_relu_xla(flat[main:], leak, sub, maxv)
    return jnp.concatenate([head, tail]).reshape(x.shape)


def general_relu_ref(x, leak=None, sub=None, maxv=None):
    """Pure-JAX reference matching the PyTorch forward."""
    if leak is not None:
        y = jnp.where(x >= 0, x, x * leak)
    else:
        y = jnp.maximum(x, 0)
    if sub is not None:
        y = y - sub
    if maxv is not None:
        y = jnp.minimum(y, maxv)
    return y.astype(x.dtype)


if __name__ == "__main__":
    key = jax.random.PRNGKey(0)
    k1, k2, k3 = jax.random.split(key, 3)

    leak, sub, maxv = 0.1, 0.4, 6.0

    # 1) NCHW input, all branches active (aligned -> lane-dense fast path).
    x = jax.random.normal(k1, (2, 4, 16, 16), dtype=jnp.float32)
    out = jax.block_until_ready(general_relu(x, leak=leak, sub=sub, maxv=maxv))
    ref = general_relu_ref(x, leak=leak, sub=sub, maxv=maxv)
    assert out.shape == x.shape and out.dtype == x.dtype
    assert jnp.allclose(out, ref, atol=1e-6, rtol=1e-6)

    # 2) Plain-ReLU path (leak=None, no sub/maxv).
    out2 = jax.block_until_ready(general_relu(x))
    assert jnp.allclose(out2, general_relu_ref(x), atol=1e-6, rtol=1e-6)

    # 3a) < 128 elements total -> pure-XLA fallback.
    x_tiny = jax.random.normal(k2, (3, 5, 7), dtype=jnp.float32)  # 105 elems
    out3a = jax.block_until_ready(
        general_relu(x_tiny, leak=leak, sub=sub, maxv=maxv))
    assert out3a.shape == x_tiny.shape
    assert jnp.allclose(out3a,
                        general_relu_ref(x_tiny, leak=leak, sub=sub, maxv=maxv),
                        atol=1e-6, rtol=1e-6)

    # 3b) Non-128-divisible element count -> Pallas prefix + XLA tail.
    x_odd = jax.random.normal(k2, (3, 5, 11), dtype=jnp.float32)  # 165 elems
    out3b = jax.block_until_ready(
        general_relu(x_odd, leak=leak, sub=sub, maxv=maxv))
    assert out3b.shape == x_odd.shape
    assert jnp.allclose(out3b,
                        general_relu_ref(x_odd, leak=leak, sub=sub, maxv=maxv),
                        atol=1e-6, rtol=1e-6)

    # 4) Multi-step grid with masked partial last block (small block target).
    x_med = jax.random.normal(k3, (3, 7, 32, 32), dtype=jnp.float32)
    out4 = jax.block_until_ready(
        general_relu(x_med, leak=0.2, maxv=3.0, target_block_bytes=32 * 1024))
    ref4 = general_relu_ref(x_med, leak=0.2, maxv=3.0)
    assert jnp.allclose(out4, ref4, atol=1e-6, rtol=1e-6)

    # 5) bfloat16 path (dtype-aware sublane rounding).
    x_bf = x.astype(jnp.bfloat16)
    out5 = jax.block_until_ready(general_relu(x_bf, leak=leak, sub=sub, maxv=maxv))
    ref5 = general_relu_ref(x_bf, leak=leak, sub=sub, maxv=maxv)
    assert out5.dtype == jnp.bfloat16
    assert jnp.allclose(out5.astype(jnp.float32), ref5.astype(jnp.float32),
                        atol=1e-2, rtol=1e-2)

    print("KERNEL_OK")
</pallas_src>

<mosaic_0001>
module attributes {stable_mosaic.version = 11 : i64} {
  func.func @_general_relu_kernel(%arg0: i32, %arg1: memref<1x2048xf32, #tpu.memory_space<vmem>>, %arg2: memref<1x2048xf32, #tpu.memory_space<vmem>>) attributes {dimension_semantics = [#tpu.dimension_semantics<parallel>], iteration_bounds = array<i64: 1>, scalar_prefetch = 0 : i64, scratch_operands = 0 : i64, tpu.core_type = #tpu.core_type<tc>, window_params = [{transform_indices = @transform_0, window_bounds = array<i64: 1, 2048>}, {transform_indices = @transform_1, window_bounds = array<i64: 1, 2048>}]} {
    %c0 = arith.constant 0 : index
    %c0_0 = arith.constant 0 : index
    %0 = vector.load %arg1[%c0, %c0_0] : memref<1x2048xf32, #tpu.memory_space<vmem>>, vector<1x2048xf32>
    %cst = arith.constant 1.000000e-01 : f32
    %1 = vector.broadcast %cst : f32 to vector<1x2048xf32>
    %2 = arith.mulf %0, %1 : vector<1x2048xf32>
    %3 = arith.maximumf %0, %2 : vector<1x2048xf32>
    %cst_1 = arith.constant 4.000000e-01 : f32
    %4 = vector.broadcast %cst_1 : f32 to vector<1x2048xf32>
    %5 = arith.subf %3, %4 : vector<1x2048xf32>
    %cst_2 = arith.constant 6.000000e+00 : f32
    %6 = vector.broadcast %cst_2 : f32 to vector<1x2048xf32>
    %7 = arith.minimumf %5, %6 : vector<1x2048xf32>
    %c0_3 = arith.constant 0 : index
    %c0_4 = arith.constant 0 : index
    %8 = vector.load %arg2[%c0_3, %c0_4] : memref<1x2048xf32, #tpu.memory_space<vmem>>, vector<1x2048xf32>
    tpu.vector_store %arg2[%c0_3, %c0_4], %7 {strides = array<i32>} : memref<1x2048xf32, #tpu.memory_space<vmem>>, vector<1x2048xf32>,
    return
  }
  func.func @transform_0(%arg0: i32) -> (i32, i32) {
    %c0_i32 = arith.constant 0 : i32
    %c0_i32_0 = arith.constant 0 : i32
    return %arg0, %c0_i32 : i32, i32
  }
  func.func @transform_1(%arg0: i32) -> (i32, i32) {
    %c0_i32 = arith.constant 0 : i32
    %c0_i32_0 = arith.constant 0 : i32
    return %arg0, %c0_i32 : i32, i32
  }
}

</mosaic_0001>

<llo_original>
// kernel: tpu_custom_call.1
$region0: #{tpu_custom_call.1}
  #allocation0 [shape = 'u32[]', space=smem, size = 0x4, offset = 0x4, fixed_abs, tag = 'smem constant byte address 0x4 - core index']
  #allocation1 [shape = 'u32[144,128]{1,0:T(1,128)}', space=vmem, size = 0x12000, scoped, tag = 'internal scratch']
  %s0 = inlined_call_operand.hbm [shape: f32[1,2048], index: 0, kind: input, shape index: {}]
  %s1 = inlined_call_operand.hbm [shape: f32[1,2048], index: 1, kind: output, shape index: {}]
  %s2 = sld [smem:[#allocation0]]
  $region18: #{tpu_custom_call.1} parent=0
    _
  %s4 = ssub.s32 1, %s2
  %s5 = scalar_select 0, %s4, %s2
  $region1: #{tpu_custom_call.1} parent=0
    #allocation2 [shape = 'u8[8192]{0}', space=vmem, size = 0x2000, scoped, tag = 'input window, operand 0, single buffered']
    #allocation3 [shape = 's32[1]{0}', space=sflag, size = 0x4, scoped, tag = 'scoped memory for tpu_custom_call.1']
    #allocation4 [shape = 's32[1]{0}', space=sflag, size = 0x4, scoped, tag = 'scoped memory for tpu_custom_call.1']
    #allocation5 [shape = 'u8[8192]{0}', space=vmem, size = 0x2000, scoped, tag = 'output window, operand 0, single buffered']
    %6 = vsyncpa [#allocation3], 0
    %7 = vsyncpa [#allocation4], 0
    // Predicated region
    $region2: #{tpu_custom_call.1} parent=1 // pred_check
      _
    $region3: #{tpu_custom_call.1} parent=1 // pred_check_branch
      %9 = sbr.rel (0) target = $region5
    $region4: #{tpu_custom_call.1} parent=1 // pred_region
      %s11 = ssub.s32 256, 256
      %12 = vsyncadd [#allocation3], %s11
      %s14 = sshll.u32 [#allocation2], 4
      %s15 = int_to_ptr.vmem [resolvable:$true] %s14
      %17 = dma.hbm_to_vmem [thread:$0]  %s0, 256, %s15, [#allocation3]
    $region5: #{tpu_custom_call.1} parent=1 // pred_fallthru
      _
    // Predicated region
    $region6: #{tpu_custom_call.1} parent=1 // pred_check
      _
    $region7: #{tpu_custom_call.1} parent=1 // pred_check_branch
      %19 = sbr.rel (0) target = $region9
    $region8: #{tpu_custom_call.1} parent=1 // pred_region
      %20 = dma.done [#allocation3], 256
    $region9: #{tpu_custom_call.1} parent=1 // pred_fallthru
      _
    %v21 = vld [vmem:[#allocation2] sm:$0xff]
    %v22 = vld [vmem:[#allocation2 + $0x8] sm:$0xff]
    %v23 = vmul.f32 %v21, 0.1
    %v24 = vmul.f32 %v22, 0.1
    %v25 = vmax.f32 %v21, %v23
    %v26 = vmax.f32 %v22, %v24
    %v27 = vsub.f32 %v25, 0.4
    %v28 = vsub.f32 %v26, 0.4
    %v29 = vmin.f32 %v27, 6.0
    %v30 = vmin.f32 %v28, 6.0
    %31 = vst [vmem:[#allocation5] sm:$0xff] %v29
    %32 = vst [vmem:[#allocation5 + $0x8] sm:$0xff] %v30
    // Predicated region
    $region10: #{tpu_custom_call.1} parent=1 // pred_check
      _
    $region11: #{tpu_custom_call.1} parent=1 // pred_check_branch
      %34 = sbr.rel (0) target = $region13
    $region12: #{tpu_custom_call.1} parent=1 // pred_region
      %s36 = ssub.s32 256, 256
      %37 = vsyncadd [#allocation4], %s36
      %s39 = sshll.u32 [#allocation5], 4
      %s40 = int_to_ptr.vmem [resolvable:$true] %s39
      %42 = dma.vmem_to_hbm [thread:$0]  %s40, 256, %s1, [#allocation4]
    $region13: #{tpu_custom_call.1} parent=1 // pred_fallthru
      _
    // Predicated region
    $region14: #{tpu_custom_call.1} parent=1 // pred_check
      _
    $region15: #{tpu_custom_call.1} parent=1 // pred_check_branch
      %44 = sbr.rel (0) target = $region17
    $region16: #{tpu_custom_call.1} parent=1 // pred_region
      %45 = dma.done [#allocation4], 256
    $region17: #{tpu_custom_call.1} parent=1 // pred_fallthru
      _
    %46 = vsyncpa [#allocation3], 1
    %47 = vsyncpa [#allocation4], 1

</llo_original>
